<compile_context>
chip_gen: v7x
topology: tpu7x:2x2x1
jax: 0.10.0
libtpu: 0.0.40
codegen_flags: <defaults>
</compile_context>

<pallas_src>
import functools

import jax
import jax.numpy as jnp
from jax.experimental import pallas as pl
from jax.experimental.pallas import tpu as pltpu


def _round_up(x, m):
    return ((x + m - 1) // m) * m


@functools.lru_cache(maxsize=1)
def _default_silu_bf16():
    """bf16 SiLU on v6e/v7x (bf16 VPU/EUP); f32 SiLU on v5e/v5p (no bf16 VPU/EUP)."""
    try:
        kind = jax.devices()[0].device_kind.lower()
        return "v5" not in kind
    except Exception:
        return True


def _mlp_head_kernel(x_ref, w1_ref, b1_ref, w2_ref, b2_ref, w3_ref, b3_ref,
                     o_ref, *, silu_bf16):
    # x: (TB, input_dim) bf16; weights bf16; biases f32; f32 MXU accumulation.
    def silu_to_bf16(h_f32):
        if silu_bf16:
            hb = h_f32.astype(jnp.bfloat16)
            return hb * jax.nn.sigmoid(hb)            # bf16 VPU + EUP
        s = h_f32 * jax.nn.sigmoid(h_f32)             # f32 path (v5e)
        return s.astype(jnp.bfloat16)

    h = jnp.dot(x_ref[...], w1_ref[...], preferred_element_type=jnp.float32)
    h = silu_to_bf16(h + b1_ref[...])
    h = jnp.dot(h, w2_ref[...], preferred_element_type=jnp.float32)
    h = silu_to_bf16(h + b2_ref[...])
    h = jnp.dot(h, w3_ref[...], preferred_element_type=jnp.float32)
    h = h + b3_ref[...]
    o_ref[...] = h.astype(o_ref.dtype)


def prepare_params(params):
    """One-time weight prep (bf16 casts + 2D bias reshapes), hoisted out of the call path."""
    w1, b1, w2, b2, w3, b3 = params
    return (w1.astype(jnp.bfloat16), b1.astype(jnp.float32).reshape(1, -1),
            w2.astype(jnp.bfloat16), b2.astype(jnp.float32).reshape(1, -1),
            w3.astype(jnp.bfloat16), b3.astype(jnp.float32).reshape(1, -1))


def matrix_extraction_head_batched(xs, prepared, num_orbitals_i, num_orbitals_j,
                                   *, block_b=512, silu_bf16=None):
    """xs: (B, input_dim). Returns (B, num_orbitals_i, num_orbitals_j) f32."""
    w1, b1, w2, b2, w3, b3 = prepared
    B, input_dim = xs.shape
    hidden = w1.shape[1]
    output_dim = num_orbitals_i * num_orbitals_j
    assert w3.shape == (hidden, output_dim)
    if silu_bf16 is None:
        silu_bf16 = _default_silu_bf16()

    # Stream activations as bf16 (the kernel would quantize anyway).
    xs_bf = xs.astype(jnp.bfloat16)

    # Pad the batch only up to a sublane multiple (8); ragged last tiles are
    # otherwise handled by the grid, so large aligned batches incur no copy.
    b_eff = max(8, _round_up(B, 8))
    if b_eff != B:
        xs_bf = jnp.pad(xs_bf, ((0, b_eff - B), (0, 0)))
    b_tile = min(_round_up(block_b, 8), b_eff)
    nb = pl.cdiv(b_eff, b_tile)

    cost = pl.CostEstimate(
        flops=2 * b_eff * (input_dim * hidden + hidden * hidden + hidden * output_dim),
        transcendentals=2 * b_eff * hidden,
        bytes_accessed=(b_eff * input_dim * 2 + b_eff * output_dim * 4
                        + (w1.size + w2.size + w3.size) * 2
                        + (b1.size + b2.size + b3.size) * 4),
    )

    # Real VMEM footprint: default-double-buffered pinned weights + streamed
    # activation tiles (double-buffered) + intermediate slack; headroom added,
    # capped at v7x's 64 MiB physical VMEM.
    weight_bytes = 2 * ((w1.size + w2.size + w3.size) * 2
                        + (b1.size + b2.size + b3.size) * 4)
    stream_bytes = 2 * (b_tile * input_dim * 2 + b_tile * output_dim * 4)
    interm_bytes = 6 * b_tile * hidden * 4
    vmem_limit = min(max(weight_bytes + stream_bytes + interm_bytes + (8 << 20),
                         16 << 20), 64 << 20)

    kernel = functools.partial(_mlp_head_kernel, silu_bf16=silu_bf16)

    out = pl.pallas_call(
        kernel,
        out_shape=jax.ShapeDtypeStruct((b_eff, output_dim), jnp.float32),
        grid_spec=pltpu.PrefetchScalarGridSpec(
            num_scalar_prefetch=0,
            grid=(nb,),
            in_specs=[
                # Activations stream over the batch grid axis...
                pl.BlockSpec((b_tile, input_dim), lambda i: (i, 0)),
                # ...weights/biases pin to block (0,0): DMA'd once, VMEM-resident.
                pl.BlockSpec((input_dim, hidden), lambda i: (0, 0)),
                pl.BlockSpec((1, hidden), lambda i: (0, 0)),
                pl.BlockSpec((hidden, hidden), lambda i: (0, 0)),
                pl.BlockSpec((1, hidden), lambda i: (0, 0)),
                pl.BlockSpec((hidden, output_dim), lambda i: (0, 0)),
                pl.BlockSpec((1, output_dim), lambda i: (0, 0)),
            ],
            # Unpadded output block: last dim == full array dim (masked store is
            # cheaper than 4x the HBM write bytes at output_dim=32).
            out_specs=pl.BlockSpec((b_tile, output_dim), lambda i: (i, 0)),
        ),
        compiler_params=pltpu.CompilerParams(
            dimension_semantics=("parallel",),      # batch axis -> megacore sharding
            vmem_limit_bytes=vmem_limit),
        cost_estimate=cost,
    )(xs_bf, w1, b1, w2, b2, w3, b3)

    if b_eff != B:
        out = out[:B]
    return out.reshape(B, num_orbitals_i, num_orbitals_j)


def matrix_extraction_head(x, prepared, num_orbitals_i, num_orbitals_j, *, silu_bf16=None):
    """Module-equivalent forward: x (input_dim,) -> (num_orbitals_i, num_orbitals_j).

    Uses an 8-row tile (sublane minimum) instead of padding one row to 128.
    """
    out = matrix_extraction_head_batched(
        x.reshape(1, -1), prepared, num_orbitals_i, num_orbitals_j,
        block_b=8, silu_bf16=silu_bf16)
    return out[0]


def init_params(key, input_dim, hidden_dim, output_dim):
    """Deterministic synthetic init (PyTorch-style uniform fan-in scaling)."""
    ks = jax.random.split(key, 6)

    def lin(kw, kb, fan_in, fan_out):
        bound = 1.0 / jnp.sqrt(fan_in)
        w = jax.random.uniform(kw, (fan_in, fan_out), jnp.float32, -bound, bound)
        b = jax.random.uniform(kb, (fan_out,), jnp.float32, -bound, bound)
        return w, b

    w1, b1 = lin(ks[0], ks[1], input_dim, hidden_dim)
    w2, b2 = lin(ks[2], ks[3], hidden_dim, hidden_dim)
    w3, b3 = lin(ks[4], ks[5], hidden_dim, output_dim)
    return (w1, b1, w2, b2, w3, b3)


def reference_forward_quantized(xs, params, ni, nj, *, silu_bf16):
    """Mirrors the kernel's quantization exactly (bf16 operands, f32 accum, matching SiLU dtype)."""
    w1, b1, w2, b2, w3, b3 = params
    bf = jnp.bfloat16

    def silu_to_bf16(h):
        if silu_bf16:
            hb = h.astype(bf)
            return hb * jax.nn.sigmoid(hb)
        return (h * jax.nn.sigmoid(h)).astype(bf)

    h = jnp.dot(xs.astype(bf), w1.astype(bf), preferred_element_type=jnp.float32) + b1
    h = silu_to_bf16(h)
    h = jnp.dot(h, w2.astype(bf), preferred_element_type=jnp.float32) + b2
    h = silu_to_bf16(h)
    h = jnp.dot(h, w3.astype(bf), preferred_element_type=jnp.float32) + b3
    return h.reshape(xs.shape[0], ni, nj)


def reference_forward_f32(xs, params, ni, nj):
    """Full-precision reference matching the PyTorch module."""
    w1, b1, w2, b2, w3, b3 = params
    h = jax.nn.silu(xs @ w1 + b1)
    h = jax.nn.silu(h @ w2 + b2)
    o = h @ w3 + b3
    return o.reshape(xs.shape[0], ni, nj)


if __name__ == "__main__":
    input_dim = 32
    hidden_dim = 128
    num_orbitals_i = 4
    num_orbitals_j = 8
    batch = 16

    key = jax.random.PRNGKey(0)
    kx, kp = jax.random.split(key)
    xs = jax.random.normal(kx, (batch, input_dim), jnp.float32)
    params = init_params(kp, input_dim, hidden_dim, num_orbitals_i * num_orbitals_j)

    # One-time weight preparation (hoisted out of the per-call path).
    prepared = prepare_params(params)
    silu_bf16 = _default_silu_bf16()

    # Batched path (weights VMEM-resident across the grid, bf16 streaming).
    out_b = matrix_extraction_head_batched(xs, prepared, num_orbitals_i, num_orbitals_j)
    out_b = jax.block_until_ready(out_b)
    assert out_b.shape == (batch, num_orbitals_i, num_orbitals_j)

    ref_q = reference_forward_quantized(xs, params, num_orbitals_i, num_orbitals_j,
                                        silu_bf16=silu_bf16)
    ref_f = reference_forward_f32(xs, params, num_orbitals_i, num_orbitals_j)
    assert jnp.allclose(out_b, ref_q, atol=2e-2, rtol=2e-2)     # vs same-quantization ref
    assert jnp.allclose(out_b, ref_f, atol=5e-2, rtol=5e-2)     # vs f32 module semantics

    # Single-vector path matches the original module's forward signature.
    out_1 = matrix_extraction_head(xs[0], prepared, num_orbitals_i, num_orbitals_j)
    out_1 = jax.block_until_ready(out_1)
    assert out_1.shape == (num_orbitals_i, num_orbitals_j)
    assert jnp.allclose(out_1, ref_q[0], atol=2e-2, rtol=2e-2)

    print("KERNEL_OK")
</pallas_src>

<mosaic_0001>
module attributes {stable_mosaic.version = 11 : i64} {
  func.func @_mlp_head_kernel(%arg0: i32, %arg1: memref<16x32xbf16, #tpu.memory_space<vmem>>, %arg2: memref<32x128xbf16, #tpu.memory_space<vmem>>, %arg3: memref<1x128xf32, #tpu.memory_space<vmem>>, %arg4: memref<128x128xbf16, #tpu.memory_space<vmem>>, %arg5: memref<1x128xf32, #tpu.memory_space<vmem>>, %arg6: memref<128x32xbf16, #tpu.memory_space<vmem>>, %arg7: memref<1x32xf32, #tpu.memory_space<vmem>>, %arg8: memref<16x32xf32, #tpu.memory_space<vmem>>) attributes {dimension_semantics = [#tpu.dimension_semantics<parallel>], iteration_bounds = array<i64: 1>, scalar_prefetch = 0 : i64, scratch_operands = 0 : i64, tpu.core_type = #tpu.core_type<tc>, window_params = [{transform_indices = @transform_0, window_bounds = array<i64: 16, 32>}, {pipeline_mode = #tpu.pipeline_mode<synchronous>, transform_indices = @transform_1, window_bounds = array<i64: 32, 128>}, {pipeline_mode = #tpu.pipeline_mode<synchronous>, transform_indices = @transform_2, window_bounds = array<i64: 1, 128>}, {pipeline_mode = #tpu.pipeline_mode<synchronous>, transform_indices = @transform_3, window_bounds = array<i64: 128, 128>}, {pipeline_mode = #tpu.pipeline_mode<synchronous>, transform_indices = @transform_4, window_bounds = array<i64: 1, 128>}, {pipeline_mode = #tpu.pipeline_mode<synchronous>, transform_indices = @transform_5, window_bounds = array<i64: 128, 32>}, {pipeline_mode = #tpu.pipeline_mode<synchronous>, transform_indices = @transform_6, window_bounds = array<i64: 1, 32>}, {transform_indices = @transform_7, window_bounds = array<i64: 16, 32>}]} {
    %c0 = arith.constant 0 : index
    %c0_0 = arith.constant 0 : index
    %0 = vector.load %arg1[%c0, %c0_0] : memref<16x32xbf16, #tpu.memory_space<vmem>>, vector<16x32xbf16>
    %c0_1 = arith.constant 0 : index
    %c0_2 = arith.constant 0 : index
    %1 = vector.load %arg2[%c0_1, %c0_2] : memref<32x128xbf16, #tpu.memory_space<vmem>>, vector<32x128xbf16>
    %cst = arith.constant dense<0.000000e+00> : vector<16x128xf32>
    %2 = tpu.matmul %0, %1, %cst {dimension_numbers = #tpu.dot_dimension_numbers<[1], [0], [0], [1], [0, 0, 1, 1], [], []>} : vector<16x32xbf16>, vector<32x128xbf16>, vector<16x128xf32> -> vector<16x128xf32>
    %c0_3 = arith.constant 0 : index
    %c0_4 = arith.constant 0 : index
    %3 = vector.load %arg3[%c0_3, %c0_4] : memref<1x128xf32, #tpu.memory_space<vmem>>, vector<1x128xf32>
    %4 = vector.broadcast %3 : vector<1x128xf32> to vector<16x128xf32>
    %5 = arith.addf %2, %4 : vector<16x128xf32>
    %6 = arith.truncf %5 : vector<16x128xf32> to vector<16x128xbf16>
    %7 = arith.negf %6 : vector<16x128xbf16>
    %8 = math.exp %7 : vector<16x128xbf16>
    %cst_5 = arith.constant 1.000000e+00 : bf16
    %9 = vector.broadcast %cst_5 : bf16 to vector<16x128xbf16>
    %10 = arith.addf %9, %8 : vector<16x128xbf16>
    %11 = arith.divf %9, %10 : vector<16x128xbf16>
    %12 = arith.mulf %6, %11 : vector<16x128xbf16>
    %c0_6 = arith.constant 0 : index
    %c0_7 = arith.constant 0 : index
    %13 = vector.load %arg4[%c0_6, %c0_7] : memref<128x128xbf16, #tpu.memory_space<vmem>>, vector<128x128xbf16>
    %cst_8 = arith.constant dense<0.000000e+00> : vector<16x128xf32>
    %14 = tpu.matmul %12, %13, %cst_8 {dimension_numbers = #tpu.dot_dimension_numbers<[1], [0], [0], [1], [0, 0, 1, 1], [], []>} : vector<16x128xbf16>, vector<128x128xbf16>, vector<16x128xf32> -> vector<16x128xf32>
    %c0_9 = arith.constant 0 : index
    %c0_10 = arith.constant 0 : index
    %15 = vector.load %arg5[%c0_9, %c0_10] : memref<1x128xf32, #tpu.memory_space<vmem>>, vector<1x128xf32>
    %16 = vector.broadcast %15 : vector<1x128xf32> to vector<16x128xf32>
    %17 = arith.addf %14, %16 : vector<16x128xf32>
    %18 = arith.truncf %17 : vector<16x128xf32> to vector<16x128xbf16>
    %19 = arith.negf %18 : vector<16x128xbf16>
    %20 = math.exp %19 : vector<16x128xbf16>
    %cst_11 = arith.constant 1.000000e+00 : bf16
    %21 = vector.broadcast %cst_11 : bf16 to vector<16x128xbf16>
    %22 = arith.addf %21, %20 : vector<16x128xbf16>
    %23 = arith.divf %21, %22 : vector<16x128xbf16>
    %24 = arith.mulf %18, %23 : vector<16x128xbf16>
    %c0_12 = arith.constant 0 : index
    %c0_13 = arith.constant 0 : index
    %25 = vector.load %arg6[%c0_12, %c0_13] : memref<128x32xbf16, #tpu.memory_space<vmem>>, vector<128x32xbf16>
    %cst_14 = arith.constant dense<0.000000e+00> : vector<16x32xf32>
    %26 = tpu.matmul %24, %25, %cst_14 {dimension_numbers = #tpu.dot_dimension_numbers<[1], [0], [0], [1], [0, 0, 1, 1], [], []>} : vector<16x128xbf16>, vector<128x32xbf16>, vector<16x32xf32> -> vector<16x32xf32>
    %c0_15 = arith.constant 0 : index
    %c0_16 = arith.constant 0 : index
    %27 = vector.load %arg7[%c0_15, %c0_16] : memref<1x32xf32, #tpu.memory_space<vmem>>, vector<1x32xf32>
    %28 = vector.broadcast %27 : vector<1x32xf32> to vector<16x32xf32>
    %29 = arith.addf %26, %28 : vector<16x32xf32>
    %c0_17 = arith.constant 0 : index
    %c0_18 = arith.constant 0 : index
    %30 = vector.load %arg8[%c0_17, %c0_18] : memref<16x32xf32, #tpu.memory_space<vmem>>, vector<16x32xf32>
    tpu.vector_store %arg8[%c0_17, %c0_18], %29 {strides = array<i32>} : memref<16x32xf32, #tpu.memory_space<vmem>>, vector<16x32xf32>,
    return
  }
  func.func @transform_0(%arg0: i32) -> (i32, i32) {
    %c0_i32 = arith.constant 0 : i32
    %c0_i32_0 = arith.constant 0 : i32
    return %arg0, %c0_i32 : i32, i32
  }
  func.func @transform_1(%arg0: i32) -> (i32, i32) {
    %c0_i32 = arith.constant 0 : i32
    %c0_i32_0 = arith.constant 0 : i32
    %c0_i32_1 = arith.constant 0 : i32
    return %c0_i32, %c0_i32_0 : i32, i32
  }
  func.func @transform_2(%arg0: i32) -> (i32, i32) {
    %c0_i32 = arith.constant 0 : i32
    %c0_i32_0 = arith.constant 0 : i32
    %c0_i32_1 = arith.constant 0 : i32
    return %c0_i32, %c0_i32_0 : i32, i32
  }
  func.func @transform_3(%arg0: i32) -> (i32, i32) {
    %c0_i32 = arith.constant 0 : i32
    %c0_i32_0 = arith.constant 0 : i32
    %c0_i32_1 = arith.constant 0 : i32
    return %c0_i32, %c0_i32_0 : i32, i32
  }
  func.func @transform_4(%arg0: i32) -> (i32, i32) {
    %c0_i32 = arith.constant 0 : i32
    %c0_i32_0 = arith.constant 0 : i32
    %c0_i32_1 = arith.constant 0 : i32
    return %c0_i32, %c0_i32_0 : i32, i32
  }
  func.func @transform_5(%arg0: i32) -> (i32, i32) {
    %c0_i32 = arith.constant 0 : i32
    %c0_i32_0 = arith.constant 0 : i32
    %c0_i32_1 = arith.constant 0 : i32
    return %c0_i32, %c0_i32_0 : i32, i32
  }
  func.func @transform_6(%arg0: i32) -> (i32, i32) {
    %c0_i32 = arith.constant 0 : i32
    %c0_i32_0 = arith.constant 0 : i32
    %c0_i32_1 = arith.constant 0 : i32
    return %c0_i32, %c0_i32_0 : i32, i32
  }
  func.func @transform_7(%arg0: i32) -> (i32, i32) {
    %c0_i32 = arith.constant 0 : i32
    %c0_i32_0 = arith.constant 0 : i32
    return %arg0, %c0_i32 : i32, i32
  }
}

</mosaic_0001>

<llo_original>
// kernel: tpu_custom_call.1
$region0: #{tpu_custom_call.1}
  #allocation0 [shape = 'u32[]', space=smem, size = 0x4, offset = 0x4, fixed_abs, tag = 'smem constant byte address 0x4 - core index']
  #allocation1 [shape = 'u32[144,128]{1,0:T(1,128)}', space=vmem, size = 0x12000, scoped, tag = 'internal scratch']
  %s0 = inlined_call_operand.hbm [shape: bf16[16,32], index: 0, kind: input, shape index: {}]
  %s1 = inlined_call_operand.vmem [shape: bf16[32,128], index: 1, kind: input, shape index: {}]
  %s2 = inlined_call_operand.vmem [shape: f32[1,128], index: 2, kind: input, shape index: {}]
  %s3 = inlined_call_operand.vmem [shape: bf16[128,128], index: 3, kind: input, shape index: {}]
  %s4 = inlined_call_operand.vmem [shape: f32[1,128], index: 4, kind: input, shape index: {}]
  %s5 = inlined_call_operand.vmem [shape: bf16[128,32], index: 5, kind: input, shape index: {}]
  %s6 = inlined_call_operand.vmem [shape: f32[1,32], index: 6, kind: input, shape index: {}]
  %s7 = inlined_call_operand.hbm [shape: f32[16,32], index: 7, kind: output, shape index: {}]
  %s8 = sld [smem:[#allocation0]]
  $region42: #{tpu_custom_call.1} parent=0
    _
  %s10 = ssub.s32 1, %s8
  %s11 = scalar_select 0, %s10, %s8
  $region1: #{tpu_custom_call.1} parent=0
    #allocation2 [shape = 'u8[4096]{0}', space=vmem, size = 0x1000, scoped, tag = 'input window, operand 0, single buffered']
    #allocation3 [shape = 's32[1]{0}', space=sflag, size = 0x4, scoped, tag = 'scoped memory for tpu_custom_call.1']
    #allocation4 [shape = 's32[1]{0}', space=sflag, size = 0x4, scoped, tag = 'scoped memory for tpu_custom_call.1']
    #allocation5 [shape = 'u8[8192]{0}', space=vmem, size = 0x2000, scoped, tag = 'output window, operand 0, single buffered']
    %12 = vsyncpa [#allocation3], 0
    %13 = vsyncpa [#allocation4], 0
    // Predicated region
    $region2: #{tpu_custom_call.1} parent=1 // pred_check
      _
    $region3: #{tpu_custom_call.1} parent=1 // pred_check_branch
      %15 = sbr.rel (0) target = $region5
    $region4: #{tpu_custom_call.1} parent=1 // pred_region
      %s17 = ssub.s32 128, 128
      %18 = vsyncadd [#allocation3], %s17
      %s19 = sshll.u32 [#allocation2], 4
      %s20 = int_to_ptr.vmem [resolvable:$true] %s19
      %25 = dma.hbm_to_vmem [thread:$0]  %s0, 128, %s20, [#allocation3], 64, 64, 4
    $region5: #{tpu_custom_call.1} parent=1 // pred_fallthru
      _
    // Predicated region
    $region6: #{tpu_custom_call.1} parent=1 // pred_check
      _
    $region7: #{tpu_custom_call.1} parent=1 // pred_check_branch
      %27 = sbr.rel (0) target = $region9
    $region8: #{tpu_custom_call.1} parent=1 // pred_region
      _
    $region9: #{tpu_custom_call.1} parent=1 // pred_fallthru
      _
    // Predicated region
    $region10: #{tpu_custom_call.1} parent=1 // pred_check
      _
    $region11: #{tpu_custom_call.1} parent=1 // pred_check_branch
      %29 = sbr.rel (0) target = $region13
    $region12: #{tpu_custom_call.1} parent=1 // pred_region
      _
    $region13: #{tpu_custom_call.1} parent=1 // pred_fallthru
      _
    // Predicated region
    $region14: #{tpu_custom_call.1} parent=1 // pred_check
      _
    $region15: #{tpu_custom_call.1} parent=1 // pred_check_branch
      %31 = sbr.rel (0) target = $region17
    $region16: #{tpu_custom_call.1} parent=1 // pred_region
      _
    $region17: #{tpu_custom_call.1} parent=1 // pred_fallthru
      _
    // Predicated region
    $region18: #{tpu_custom_call.1} parent=1 // pred_check
      _
    $region19: #{tpu_custom_call.1} parent=1 // pred_check_branch
      %33 = sbr.rel (0) target = $region21
    $region20: #{tpu_custom_call.1} parent=1 // pred_region
      _
    $region21: #{tpu_custom_call.1} parent=1 // pred_fallthru
      _
    // Predicated region
    $region22: #{tpu_custom_call.1} parent=1 // pred_check
      _
    $region23: #{tpu_custom_call.1} parent=1 // pred_check_branch
      %35 = sbr.rel (0) target = $region25
    $region24: #{tpu_custom_call.1} parent=1 // pred_region
      _
    $region25: #{tpu_custom_call.1} parent=1 // pred_fallthru
      _
    // Predicated region
    $region26: #{tpu_custom_call.1} parent=1 // pred_check
      _
    $region27: #{tpu_custom_call.1} parent=1 // pred_check_branch
      %37 = sbr.rel (0) target = $region29
    $region28: #{tpu_custom_call.1} parent=1 // pred_region
      _
    $region29: #{tpu_custom_call.1} parent=1 // pred_fallthru
      _
    // Predicated region
    $region30: #{tpu_custom_call.1} parent=1 // pred_check
      _
    $region31: #{tpu_custom_call.1} parent=1 // pred_check_branch
      %39 = sbr.rel (0) target = $region33
    $region32: #{tpu_custom_call.1} parent=1 // pred_region
      %40 = dma.done [#allocation3], 128
    $region33: #{tpu_custom_call.1} parent=1 // pred_fallthru
      _
    %v43 = vld [vmem:[#allocation2] sm:$0xf]
    %v44 = vld [vmem:[#allocation2 + $0x4] sm:$0xf]
    %v45 = vld [vmem:[%s1] sm:$0xf]
    %v46 = vld [vmem:[%s1 + $0x4] sm:$0xf]
    %v47 = vld [vmem:[%s1 + $0x8] sm:$0xf]
    %v48 = vld [vmem:[%s1 + $0xc] sm:$0xf]
    %v49 = vld [vmem:[%s2] sm:$0x1]
    %v51 = vlaneseq
    %v52 = vshrl.u32 %v51, 7
    %v53 = vsub.s32 0, %v52
    %v54 = vrot.slane %v49, %v53
    %v58 = vunpack.c.l.b16 %v43
    %v59 = vunpack.c.l.b16 %v44
    %v60 = vpack.c.b16 %v59, %v58
    %v65 = vunpack.c.l.b16 %v45
    %v66 = vunpack.c.l.b16 %v46
    %v67 = vunpack.c.l.b16 %v47
    %v68 = vunpack.c.l.b16 %v48
    %v69 = vpack.c.b16 %v66, %v65
    %v70 = vpack.c.b16 %v68, %v67
    %vm73 = vcmask 261120
    %v75 = vsel %vm73, %v60, 0
    %77 = vmatprep.subr.bf16.mxu0 0
    %78 = vmatpush1.bf16.msra.mxu0 %v69
    %79 = vmatprep.subr.bf16.mxu0 0
    %80 = vmatpush1.bf16.msra.mxu0 %v70
    %81 = vmatprep.subr.bf16.mxu0 0
    %82 = vmatpush1.bf16.msra.mxu0 0
    %83 = vmatprep.subr.bf16.mxu0 0
    %84 = vmatpush1.bf16.msra.mxu0 0
    %85 = vmatprep.subr.bf16.mxu0 0
    %86 = vmatpush1.bf16.msra.mxu0 0
    %87 = vmatprep.subr.bf16.mxu0 0
    %88 = vmatpush1.bf16.msra.mxu0 0
    %89 = vmatprep.subr.bf16.mxu0 0
    %90 = vmatpush1.bf16.msra.mxu0 0
    %91 = vmatprep.subr.bf16.mxu0 0
    %92 = vmatpush1.bf16.msra.mxu0 0
    %93 = vmatprep.subr.bf16.mxu0 0
    %94 = vmatpush1.bf16.msra.mxu0 0
    %95 = vmatprep.subr.bf16.mxu0 0
    %96 = vmatpush1.bf16.msra.mxu0 0
    %97 = vmatprep.subr.bf16.mxu0 0
    %98 = vmatpush1.bf16.msra.mxu0 0
    %99 = vmatprep.subr.bf16.mxu0 0
    %100 = vmatpush1.bf16.msra.mxu0 0
    %101 = vmatprep.subr.bf16.mxu0 0
    %102 = vmatpush1.bf16.msra.mxu0 0
    %103 = vmatprep.subr.bf16.mxu0 0
    %104 = vmatpush1.bf16.msra.mxu0 0
    %105 = vmatprep.subr.bf16.mxu0 0
    %106 = vmatpush1.bf16.msra.mxu0 0
    %107 = vmatprep.subr.bf16.mxu0 0
    %108 = vmatpush1.bf16.msra.mxu0 0
    %109 = vmatprep.mubr.bf16.mxu0 0
    %110 = vmatmul.mubr.bf16.gmra.mrb[0].mxu0 %v75
    %v111 = vpop.f32.mrb[0].mxu0
    %v112 = vadd.f32 %v54, %v111
    %v113 = vpop.f32.mrb[0].mxu0
    %v114 = vpop.f32.mrb[0].mxu0
    %v115 = vadd.f32 %v54, %v114
    %v116 = vpop.f32.mrb[0].mxu0
    %117 = vdwg.mxu0
    %v118 = vpack.c.bf16 %v115, %v112
    %v119 = vxor.u32 %v118, 2147516416
    %v121 = vmul.bf16 %v119, 1069105081
    %v122 = vpow.bf16.pop %v121
    %v123 = vadd.bf16 %v122, 1065369472
    %v124 = vrcp.bf16.pop %v123
    %v125 = vmul.bf16 1065369472, %v124
    %v126 = vmul.bf16 %v118, %v125
    %v127 = vld [vmem:[%s3] sm:$0xf]
    %v128 = vld [vmem:[%s3 + $0x4] sm:$0xf]
    %v129 = vld [vmem:[%s3 + $0x8] sm:$0xf]
    %v130 = vld [vmem:[%s3 + $0xc] sm:$0xf]
    %v131 = vld [vmem:[%s3 + $0x10] sm:$0xf]
    %v132 = vld [vmem:[%s3 + $0x14] sm:$0xf]
    %v133 = vld [vmem:[%s3 + $0x18] sm:$0xf]
    %v134 = vld [vmem:[%s3 + $0x1c] sm:$0xf]
    %v135 = vld [vmem:[%s3 + $0x20] sm:$0xf]
    %v136 = vld [vmem:[%s3 + $0x24] sm:$0xf]
    %v137 = vld [vmem:[%s3 + $0x28] sm:$0xf]
    %v138 = vld [vmem:[%s3 + $0x2c] sm:$0xf]
    %v139 = vld [vmem:[%s3 + $0x30] sm:$0xf]
    %v140 = vld [vmem:[%s3 + $0x34] sm:$0xf]
    %v141 = vld [vmem:[%s3 + $0x38] sm:$0xf]
    %v142 = vld [vmem:[%s3 + $0x3c] sm:$0xf]
    %v143 = vld [vmem:[%s4] sm:$0x1]
    %v145 = vlaneseq
    %v146 = vshrl.u32 %v145, 7
    %v147 = vsub.s32 0, %v146
    %v148 = vrot.slane %v143, %v147
    %v166 = vunpack.c.l.b16 %v127
    %v167 = vunpack.c.l.b16 %v128
    %v168 = vunpack.c.l.b16 %v129
    %v169 = vunpack.c.l.b16 %v130
    %v170 = vunpack.c.l.b16 %v131
    %v171 = vunpack.c.l.b16 %v132
    %v172 = vunpack.c.l.b16 %v133
    %v173 = vunpack.c.l.b16 %v134
    %v174 = vunpack.c.l.b16 %v135
    %v175 = vunpack.c.l.b16 %v136
    %v176 = vunpack.c.l.b16 %v137
    %v177 = vunpack.c.l.b16 %v138
    %v178 = vunpack.c.l.b16 %v139
    %v179 = vunpack.c.l.b16 %v140
    %v180 = vunpack.c.l.b16 %v141
    %v181 = vunpack.c.l.b16 %v142
    %v182 = vpack.c.b16 %v167, %v166
    %v183 = vpack.c.b16 %v169, %v168
    %v184 = vpack.c.b16 %v171, %v170
    %v185 = vpack.c.b16 %v173, %v172
    %v186 = vpack.c.b16 %v175, %v174
    %v187 = vpack.c.b16 %v177, %v176
    %v188 = vpack.c.b16 %v179, %v178
    %v189 = vpack.c.b16 %v181, %v180
    %198 = vmatprep.subr.bf16.mxu0 0
    %199 = vmatpush1.bf16.msra.mxu0 %v182
    %200 = vmatprep.subr.bf16.mxu0 0
    %201 = vmatpush1.bf16.msra.mxu0 %v183
    %202 = vmatprep.subr.bf16.mxu0 0
    %203 = vmatpush1.bf16.msra.mxu0 %v184
    %204 = vmatprep.subr.bf16.mxu0 0
    %205 = vmatpush1.bf16.msra.mxu0 %v185
    %206 = vmatprep.subr.bf16.mxu0 0
    %207 = vmatpush1.bf16.msra.mxu0 %v186
    %208 = vmatprep.subr.bf16.mxu0 0
    %209 = vmatpush1.bf16.msra.mxu0 %v187
    %210 = vmatprep.subr.bf16.mxu0 0
    %211 = vmatpush1.bf16.msra.mxu0 %v188
    %212 = vmatprep.subr.bf16.mxu0 0
    %213 = vmatpush1.bf16.msra.mxu0 %v189
    %214 = vmatprep.subr.bf16.mxu0 0
    %215 = vmatpush1.bf16.msra.mxu0 0
    %216 = vmatprep.subr.bf16.mxu0 0
    %217 = vmatpush1.bf16.msra.mxu0 0
    %218 = vmatprep.subr.bf16.mxu0 0
    %219 = vmatpush1.bf16.msra.mxu0 0
    %220 = vmatprep.subr.bf16.mxu0 0
    %221 = vmatpush1.bf16.msra.mxu0 0
    %222 = vmatprep.subr.bf16.mxu0 0
    %223 = vmatpush1.bf16.msra.mxu0 0
    %224 = vmatprep.subr.bf16.mxu0 0
    %225 = vmatpush1.bf16.msra.mxu0 0
    %226 = vmatprep.subr.bf16.mxu0 0
    %227 = vmatpush1.bf16.msra.mxu0 0
    %228 = vmatprep.subr.bf16.mxu0 0
    %229 = vmatpush1.bf16.msra.mxu0 0
    %230 = vmatprep.mubr.bf16.mxu0 0
    %231 = vmatmul.mubr.bf16.gmra.mrb[0].mxu0 %v126
    %v232 = vpop.f32.mrb[0].mxu0
    %v233 = vadd.f32 %v148, %v232
    %v234 = vpop.f32.mrb[0].mxu0
    %v235 = vpop.f32.mrb[0].mxu0
    %v236 = vadd.f32 %v148, %v235
    %v237 = vpop.f32.mrb[0].mxu0
    %238 = vdwg.mxu0
    %v239 = vpack.c.bf16 %v236, %v233
    %v240 = vxor.u32 %v239, 2147516416
    %v242 = vmul.bf16 %v240, 1069105081
    %v243 = vpow.bf16.pop %v242
    %v244 = vadd.bf16 %v243, 1065369472
    %v245 = vrcp.bf16.pop %v244
    %v246 = vmul.bf16 1065369472, %v245
    %v247 = vmul.bf16 %v239, %v246
    %v248 = vld [vmem:[%s5] sm:$0xf]
    %v249 = vld [vmem:[%s5 + $0x4] sm:$0xf]
    %v250 = vld [vmem:[%s5 + $0x8] sm:$0xf]
    %v251 = vld [vmem:[%s5 + $0xc] sm:$0xf]
    %v252 = vld [vmem:[%s5 + $0x10] sm:$0xf]
    %v253 = vld [vmem:[%s5 + $0x14] sm:$0xf]
    %v254 = vld [vmem:[%s5 + $0x18] sm:$0xf]
    %v255 = vld [vmem:[%s5 + $0x1c] sm:$0xf]
    %v256 = vld [vmem:[%s5 + $0x20] sm:$0xf]
    %v257 = vld [vmem:[%s5 + $0x24] sm:$0xf]
    %v258 = vld [vmem:[%s5 + $0x28] sm:$0xf]
    %v259 = vld [vmem:[%s5 + $0x2c] sm:$0xf]
    %v260 = vld [vmem:[%s5 + $0x30] sm:$0xf]
    %v261 = vld [vmem:[%s5 + $0x34] sm:$0xf]
    %v262 = vld [vmem:[%s5 + $0x38] sm:$0xf]
    %v263 = vld [vmem:[%s5 + $0x3c] sm:$0xf]
    %v264 = vld [vmem:[%s6] sm:$0x1]
    %v266 = vlaneseq
    %v267 = vshrl.u32 %v266, 7
    %v268 = vsub.s32 0, %v267
    %v269 = vrot.slane %v264, %v268
    %v287 = vunpack.c.l.b16 %v248
    %v288 = vunpack.c.l.b16 %v249
    %v289 = vunpack.c.l.b16 %v250
    %v290 = vunpack.c.l.b16 %v251
    %v291 = vunpack.c.l.b16 %v252
    %v292 = vunpack.c.l.b16 %v253
    %v293 = vunpack.c.l.b16 %v254
    %v294 = vunpack.c.l.b16 %v255
    %v295 = vunpack.c.l.b16 %v256
    %v296 = vunpack.c.l.b16 %v257
    %v297 = vunpack.c.l.b16 %v258
    %v298 = vunpack.c.l.b16 %v259
    %v299 = vunpack.c.l.b16 %v260
    %v300 = vunpack.c.l.b16 %v261
    %v301 = vunpack.c.l.b16 %v262
    %v302 = vunpack.c.l.b16 %v263
    %v303 = vpack.c.b16 %v288, %v287
    %v304 = vpack.c.b16 %v290, %v289
    %v305 = vpack.c.b16 %v292, %v291
    %v306 = vpack.c.b16 %v294, %v293
    %v307 = vpack.c.b16 %v296, %v295
    %v308 = vpack.c.b16 %v298, %v297
    %v309 = vpack.c.b16 %v300, %v299
    %v310 = vpack.c.b16 %v302, %v301
    %319 = vmatprep.subr.bf16.mxu0 0
    %320 = vmatpush1.bf16.msra.mxu0 %v303
    %321 = vmatprep.subr.bf16.mxu0 0
    %322 = vmatpush1.bf16.msra.mxu0 %v304
    %323 = vmatprep.subr.bf16.mxu0 0
    %324 = vmatpush1.bf16.msra.mxu0 %v305
    %325 = vmatprep.subr.bf16.mxu0 0
    %326 = vmatpush1.bf16.msra.mxu0 %v306
    %327 = vmatprep.subr.bf16.mxu0 0
    %328 = vmatpush1.bf16.msra.mxu0 %v307
    %329 = vmatprep.subr.bf16.mxu0 0
    %330 = vmatpush1.bf16.msra.mxu0 %v308
    %331 = vmatprep.subr.bf16.mxu0 0
    %332 = vmatpush1.bf16.msra.mxu0 %v309
    %333 = vmatprep.subr.bf16.mxu0 0
    %334 = vmatpush1.bf16.msra.mxu0 %v310
    %335 = vmatprep.subr.bf16.mxu0 0
    %336 = vmatpush1.bf16.msra.mxu0 0
    %337 = vmatprep.subr.bf16.mxu0 0
    %338 = vmatpush1.bf16.msra.mxu0 0
    %339 = vmatprep.subr.bf16.mxu0 0
    %340 = vmatpush1.bf16.msra.mxu0 0
    %341 = vmatprep.subr.bf16.mxu0 0
    %342 = vmatpush1.bf16.msra.mxu0 0
    %343 = vmatprep.subr.bf16.mxu0 0
    %344 = vmatpush1.bf16.msra.mxu0 0
    %345 = vmatprep.subr.bf16.mxu0 0
    %346 = vmatpush1.bf16.msra.mxu0 0
    %347 = vmatprep.subr.bf16.mxu0 0
    %348 = vmatpush1.bf16.msra.mxu0 0
    %349 = vmatprep.subr.bf16.mxu0 0
    %350 = vmatpush1.bf16.msra.mxu0 0
    %351 = vmatprep.mubr.bf16.mxu0 0
    %352 = vmatmul.mubr.bf16.gmra.mrb[0].mxu0 %v247
    %v353 = vpop.f32.mrb[0].mxu0
    %v354 = vadd.f32 %v269, %v353
    %v355 = vpop.f32.mrb[0].mxu0
    %v356 = vpop.f32.mrb[0].mxu0
    %v357 = vadd.f32 %v269, %v356
    %v358 = vpop.f32.mrb[0].mxu0
    %359 = vdwg.mxu0
    %360 = vst.msk [vmem:[#allocation5] sm:$0xff] %vm73, %v354
    %361 = vst.msk [vmem:[#allocation5 + $0x8] sm:$0xff] %vm73, %v357
    // Predicated region
    $region34: #{tpu_custom_call.1} parent=1 // pred_check
      _
    $region35: #{tpu_custom_call.1} parent=1 // pred_check_branch
      %363 = sbr.rel (0) target = $region37
    $region36: #{tpu_custom_call.1} parent=1 // pred_region
      %s365 = ssub.s32 256, 256
      %366 = vsyncadd [#allocation4], %s365
      %s367 = sshll.u32 [#allocation5], 4
      %s368 = int_to_ptr.vmem [resolvable:$true] %s367
      %373 = dma.vmem_to_hbm [thread:$0]  %s368, 256, %s7, [#allocation4], 128, 128, 8
    $region37: #{tpu_custom_call.1} parent=1 // pred_fallthru
      _
    // Predicated region
    $region38: #{tpu_custom_call.1} parent=1 // pred_check
      _
    $region39: #{tpu_custom_call.1} parent=1 // pred_check_branch
      %375 = sbr.rel (0) target = $region41
    $region40: #{tpu_custom_call.1} parent=1 // pred_region
      %376 = dma.done [#allocation4], 256
    $region41: #{tpu_custom_call.1} parent=1 // pred_fallthru
      _
    %377 = vsyncpa [#allocation3], 1
    %378 = vsyncpa [#allocation4], 1

</llo_original>
